<compile_context>
chip_gen: v7x
topology: tpu7x:2x2x1
jax: 0.10.0
libtpu: 0.0.40
codegen_flags: <defaults>
</compile_context>

<pallas_src>
import jax
import jax.numpy as jnp
from jax.experimental import pallas as pl
from jax.experimental.pallas import tpu as pltpu


def channel_mix_kernel(x_ref, prev_ref, nstart_ref, miu_k_ref, miu_r_ref,
                       wk_ref, wv_ref, wr_ref, o_ref, xk_sc):
    """Grid = (row_tiles, ffn_tiles); the FFN axis is a reduction ("arbitrary")."""
    f = pl.program_id(1)
    n_f = pl.num_programs(1)
    tm = x_ref.shape[0]

    def mixed(miu):
        # Fused token shift (ZeroPad2d((0,0,1,-1))): row j <- row j-1 via an XLU
        # sublane roll (otherwise-idle unit, no MXU pass), row 0 <- last row of
        # the previous tile, and rows that start a new sequence (t == 0) zeroed.
        x = x_ref[...].astype(jnp.float32)                       # (tm, C)
        rolled = pltpu.roll(x, shift=1, axis=0)                  # row j <- x[j-1] (row 0 wraps)
        local_row = jax.lax.broadcasted_iota(jnp.int32, (tm, 1), 0)
        prev = prev_ref[0].astype(jnp.float32)                   # (1, C) boundary row
        x_last = jnp.where(local_row == 0, prev, rolled)
        x_last = x_last * nstart_ref[...].astype(jnp.float32)    # (tm, 1) 0/1 mask
        # ChannelMix calls TimeMix.lerp(a, b_minus_a, miu) = a + b_minus_a*miu
        # with x_last in the b_minus_a slot, i.e. mixed = x + x_last * miu.
        return x + x_last * miu.astype(jnp.float32)

    # Once per row tile: cache the bf16 k-mix and zero the resident output block.
    @pl.when(f == 0)
    def _init():
        xk_sc[...] = mixed(miu_k_ref[...]).astype(xk_sc.dtype)
        o_ref[...] = jnp.zeros_like(o_ref)

    # kv partial product for this FFN chunk: bf16 operands, f32 MXU accumulation,
    # accumulated directly into the resident f32 output block (no acc scratch).
    k = jnp.dot(xk_sc[...], wk_ref[...], preferred_element_type=jnp.float32)   # (tm, tf)
    k = jnp.maximum(k, 0.0)
    k = (k * k).astype(jnp.bfloat16)                                           # relu(k)**2
    o_ref[...] = o_ref[...] + jnp.dot(k, wv_ref[...],
                                      preferred_element_type=jnp.float32)      # (tm, C)

    # Last FFN chunk: recompute the r-mix from the still-resident x tile (cheap
    # VPU/XLU work, saves a (tm, C) scratch), apply the receptance gate, write out.
    @pl.when(f == n_f - 1)
    def _final():
        xr = mixed(miu_r_ref[...]).astype(jnp.bfloat16)
        r = jnp.dot(xr, wr_ref[...], preferred_element_type=jnp.float32)
        o_ref[...] = jax.nn.sigmoid(r) * o_ref[...]


def _vmem_capacity_bytes():
    try:
        return int(pltpu.get_tpu_info().vmem_capacity_bytes)
    except Exception:
        return 64 << 20          # conservative: v7x per-TensorCore VMEM


def channel_mix(x, miu_k, miu_r, w_k, w_v, w_r, *, tm=None, tf=None):
    """x: (B, T, C).  Weights stored as (in, out) so activations do x @ W.

    The kernel accumulates in f32 (the output block is f32) and the result is
    cast back to x.dtype; passing bf16 activations halves the input DMA traffic.
    """
    B, T, C = x.shape
    F = w_k.shape[1]
    BT = B * T

    vmem_cap = _vmem_capacity_bytes()

    # ---- tile selection -------------------------------------------------------
    # W_k/W_v are streamed once per row tile => arithmetic intensity ~ tm bf16
    # flops per weight byte.  MXU/HBM crossover: ~650 flops/B (v6e), ~310 (v7x),
    # ~240 (v5e).  128 MiB-VMEM parts take tm=1024; 64 MiB parts (v7x) tm=512.
    if tm is None:
        tm_target = 1024 if vmem_cap > (96 << 20) else 512
        tm = BT if BT <= tm_target else tm_target
    assert tm == BT or tm % 8 == 0, "row tile must be a multiple of 8 (or all rows)"
    n_row = pl.cdiv(BT, tm)

    # tf is the kv-matmul contraction dim: keep >= 256 for the 256-wide MXUs of
    # v6e/v7x (128 only as a last-resort fallback; acceptable on v5e's 128-MXU).
    if tf is None:
        if F <= 1024:
            tf = F
        else:
            tf = F
            for cand in (512, 256, 128):
                if F % cand == 0:
                    tf = cand
                    break
    assert F % tf == 0, "FFN tile must divide dim_ffn (it is a reduction axis)"
    assert tf == F or tf % 128 == 0, "FFN tile must be lane-aligned (multiple of 128)"
    n_f = F // tf

    # ---- tiny glue inputs (no full-size x_last is ever materialized in HBM) ----
    xf = x.reshape(BT, C)
    starts = jnp.arange(n_row, dtype=jnp.int32) * tm
    prev_rows = xf[jnp.maximum(starts - 1, 0)].reshape(n_row, 1, C)   # tile boundary rows
    notstart = (jnp.arange(BT, dtype=jnp.int32) % T != 0)
    notstart = notstart.astype(jnp.float32).reshape(BT, 1)            # 0.0 where t == 0

    miu_k = jnp.asarray(miu_k, jnp.float32).reshape(1, C)
    miu_r = jnp.asarray(miu_r, jnp.float32).reshape(1, C)
    wk_bf = w_k.astype(jnp.bfloat16)
    wv_bf = w_v.astype(jnp.bfloat16)
    wr_bf = w_r.astype(jnp.bfloat16)

    # ---- VMEM budget / scheduler hints ------------------------------------------
    f32b, bf16b = 4, 2
    xb = x.dtype.itemsize
    est_vmem = (2 * tm * C * xb              # x tile (double-buffered)
                + 2 * tm * C * f32b          # f32 output tile (resident accumulator)
                + 2 * (3 * C + tm) * f32b    # prev row + miu_k/miu_r + notstart
                + 2 * C * tf * bf16b         # W_k block
                + 2 * tf * C * bf16b         # W_v block
                + 2 * C * C * bf16b          # W_r (constant-index block, DMA'd once)
                + tm * C * bf16b             # xk scratch
                + tm * tf * f32b             # k intermediate
                + tm * C * f32b)             # r intermediate (final step)
    # Never request the whole physical VMEM (v7x = 64 MiB/TC): leave headroom for
    # Mosaic internal scratch and pipelining.
    vmem_limit = int(min(max(est_vmem * 3 // 2 + (4 << 20), 32 << 20),
                         (vmem_cap * 85) // 100))

    cost = pl.CostEstimate(
        flops=int(2 * BT * (2 * C * F + C * C)),
        transcendentals=int(BT * C),
        # Weights are re-streamed once per row tile (their index_map depends on f,
        # which resets for every i) -- count them n_row times.
        bytes_accessed=int(BT * C * (xb + f32b)
                           + n_row * (2 * C * F + C * C) * bf16b
                           + n_row * (C * xb + tm * f32b)),
    )

    out = pl.pallas_call(
        channel_mix_kernel,
        out_shape=jax.ShapeDtypeStruct((BT, C), jnp.float32),
        grid_spec=pltpu.PrefetchScalarGridSpec(
            num_scalar_prefetch=0,
            grid=(n_row, n_f),
            in_specs=[
                pl.BlockSpec((tm, C), lambda i, f: (i, 0)),        # x
                pl.BlockSpec((1, 1, C), lambda i, f: (i, 0, 0)),   # tile boundary rows
                pl.BlockSpec((tm, 1), lambda i, f: (i, 0)),        # not-sequence-start mask
                pl.BlockSpec((1, C), lambda i, f: (0, 0)),         # miu_k
                pl.BlockSpec((1, C), lambda i, f: (0, 0)),         # miu_r
                pl.BlockSpec((C, tf), lambda i, f: (0, f)),        # W_k (bf16)
                pl.BlockSpec((tf, C), lambda i, f: (f, 0)),        # W_v (bf16)
                # TODO(synk): single-buffer W_r (pipeline_mode=pl.Buffered(1)) to
                # halve its VMEM footprint on v7x; it is DMA'd only once anyway.
                pl.BlockSpec((C, C), lambda i, f: (0, 0)),         # W_r (bf16)
            ],
            out_specs=pl.BlockSpec((tm, C), lambda i, f: (i, 0)),
            scratch_shapes=[
                pltpu.VMEM((tm, C), jnp.bfloat16),   # xk (mixed k-input, bf16)
            ],
        ),
        compiler_params=pltpu.CompilerParams(
            dimension_semantics=("parallel", "arbitrary"),
            vmem_limit_bytes=vmem_limit),
        cost_estimate=cost,
    )(xf, prev_rows, notstart, miu_k, miu_r, wk_bf, wv_bf, wr_bf)

    return out.reshape(B, T, C).astype(x.dtype)


def make_params(embed_dim, n_blocks, layer_id, dim_ffn, key):
    """Deterministic parameter construction mirroring ChannelMix.__init__ shapes."""
    ratio_1_to_almost0 = 1.0 - layer_id / n_blocks
    ddd = jnp.arange(embed_dim, dtype=jnp.float32) / embed_dim          # (C,)
    miu = 1.0 - jnp.power(ddd, ratio_1_to_almost0)
    miu_k = miu.reshape(1, embed_dim)
    miu_r = miu.reshape(1, embed_dim)

    k1, k2, k3 = jax.random.split(key, 3)

    # nn.Linear(in, out, bias=False): weight (out, in); we store the transposed (in, out).
    def linear_t(k, fan_in, fan_out):
        bound = 1.0 / jnp.sqrt(fan_in)
        w = jax.random.uniform(k, (fan_out, fan_in), jnp.float32, -bound, bound)
        return w.T

    w_k = linear_t(k1, embed_dim, dim_ffn)     # (C, F)
    w_v = linear_t(k2, dim_ffn, embed_dim)     # (F, C)
    w_r = linear_t(k3, embed_dim, embed_dim)   # (C, C)
    return miu_k, miu_r, w_k, w_v, w_r


def channel_mix_ref(x, miu_k, miu_r, w_k, w_v, w_r):
    """Pure-f32 reference of ChannelMix.forward."""
    B, T, C = x.shape
    x_last = jnp.concatenate([jnp.zeros((B, 1, C), x.dtype), x[:, :-1, :]], axis=1)
    k = x + x_last * miu_k[None]
    k = jnp.maximum(k @ w_k, 0.0) ** 2
    kv = k @ w_v
    r = jax.nn.sigmoid((x + x_last * miu_r[None]) @ w_r)
    return r * kv


def channel_mix_ref_bf16(x, miu_k, miu_r, w_k, w_v, w_r):
    """Reference with the kernel's bf16-operand / f32-accumulation numerics."""
    B, T, C = x.shape
    x_last = jnp.concatenate([jnp.zeros((B, 1, C), x.dtype), x[:, :-1, :]], axis=1)
    xk = (x + x_last * miu_k[None]).astype(jnp.bfloat16).reshape(B * T, C)
    xr = (x + x_last * miu_r[None]).astype(jnp.bfloat16).reshape(B * T, C)
    k = jnp.dot(xk, w_k.astype(jnp.bfloat16), preferred_element_type=jnp.float32)
    k = jnp.maximum(k, 0.0)
    k = (k * k).astype(jnp.bfloat16)
    kv = jnp.dot(k, w_v.astype(jnp.bfloat16), preferred_element_type=jnp.float32)
    r = jax.nn.sigmoid(jnp.dot(xr, w_r.astype(jnp.bfloat16),
                               preferred_element_type=jnp.float32))
    return (r * kv).reshape(B, T, C)


if __name__ == "__main__":
    B, T, C = 2, 16, 32
    dim_ffn = 8 * C                       # 256 -> two FFN chunks with tf=128
    n_blocks, layer_id = 4, 1

    key = jax.random.PRNGKey(0)
    kx, kp = jax.random.split(key)
    x = jax.random.normal(kx, (B, T, C), jnp.float32)
    miu_k, miu_r, w_k, w_v, w_r = make_params(C, n_blocks, layer_id, dim_ffn, kp)

    ref_bf16 = channel_mix_ref_bf16(x, miu_k, miu_r, w_k, w_v, w_r)
    ref_f32 = channel_mix_ref(x, miu_k, miu_r, w_k, w_v, w_r)

    # (1) tm=8 < T exercises the fused cross-tile token-shift boundary and the
    #     multi-tile "parallel" row axis; tf=128 exercises the FFN reduction axis
    #     (accumulation directly into the resident output block).
    out = channel_mix(x, miu_k, miu_r, w_k, w_v, w_r, tm=8, tf=128)
    out = jax.block_until_ready(out)
    assert out.shape == (B, T, C)
    assert jnp.allclose(out, ref_bf16, atol=1e-2, rtol=1e-2), \
        float(jnp.max(jnp.abs(out - ref_bf16)))
    assert jnp.allclose(out, ref_f32, atol=1e-1, rtol=5e-2), \
        float(jnp.max(jnp.abs(out - ref_f32)))

    # (2) default (generation-aware) tile selection: single row tile, single FFN chunk.
    out_d = channel_mix(x, miu_k, miu_r, w_k, w_v, w_r)
    out_d = jax.block_until_ready(out_d)
    assert jnp.allclose(out_d, ref_bf16, atol=1e-2, rtol=1e-2), \
        float(jnp.max(jnp.abs(out_d - ref_bf16)))

    print("KERNEL_OK")
</pallas_src>

<mosaic_0001>
module attributes {stable_mosaic.version = 11 : i64} {
  func.func @channel_mix_kernel(%arg0: i32, %arg1: i32, %arg2: memref<8x32xf32, #tpu.memory_space<vmem>>, %arg3: memref<1x1x32xf32, #tpu.memory_space<vmem>>, %arg4: memref<8x1xf32, #tpu.memory_space<vmem>>, %arg5: memref<1x32xf32, #tpu.memory_space<vmem>>, %arg6: memref<1x32xf32, #tpu.memory_space<vmem>>, %arg7: memref<32x128xbf16, #tpu.memory_space<vmem>>, %arg8: memref<128x32xbf16, #tpu.memory_space<vmem>>, %arg9: memref<32x32xbf16, #tpu.memory_space<vmem>>, %arg10: memref<8x32xf32, #tpu.memory_space<vmem>>, %arg11: memref<8x32xbf16, #tpu.memory_space<vmem>>) attributes {dimension_semantics = [#tpu.dimension_semantics<parallel>, #tpu.dimension_semantics<arbitrary>], iteration_bounds = array<i64: 4, 2>, scalar_prefetch = 0 : i64, scratch_operands = 1 : i64, tpu.core_type = #tpu.core_type<tc>, window_params = [{transform_indices = @transform_0, window_bounds = array<i64: 8, 32>}, {transform_indices = @transform_1, window_bounds = array<i64: 1, 1, 32>}, {transform_indices = @transform_2, window_bounds = array<i64: 8, 1>}, {pipeline_mode = #tpu.pipeline_mode<synchronous>, transform_indices = @transform_3, window_bounds = array<i64: 1, 32>}, {pipeline_mode = #tpu.pipeline_mode<synchronous>, transform_indices = @transform_4, window_bounds = array<i64: 1, 32>}, {transform_indices = @transform_5, window_bounds = array<i64: 32, 128>}, {transform_indices = @transform_6, window_bounds = array<i64: 128, 32>}, {pipeline_mode = #tpu.pipeline_mode<synchronous>, transform_indices = @transform_7, window_bounds = array<i64: 32, 32>}, {transform_indices = @transform_8, window_bounds = array<i64: 8, 32>}]} {
    %c0_i32 = arith.constant 0 : i32
    %0 = arith.cmpi eq, %arg1, %c0_i32 : i32
    %1 = arith.extui %0 : i1 to i32
    %c0_i32_0 = arith.constant 0 : i32
    %2 = arith.cmpi ne, %1, %c0_i32_0 : i32
    scf.if %2 {
      %c0_13 = arith.constant 0 : index
      %c0_14 = arith.constant 0 : index
      %18 = vector.load %arg5[%c0_13, %c0_14] : memref<1x32xf32, #tpu.memory_space<vmem>>, vector<1x32xf32>
      %c0_15 = arith.constant 0 : index
      %c0_16 = arith.constant 0 : index
      %19 = vector.load %arg2[%c0_15, %c0_16] : memref<8x32xf32, #tpu.memory_space<vmem>>, vector<8x32xf32>
      %c1_i32_17 = arith.constant 1 : i32
      %20 = tpu.dynamic_rotate %19 by %c1_i32_17 dim 0 : vector<8x32xf32>, i32 -> vector<8x32xf32>
      %21 = tpu.iota {dimensions = array<i32: 0>} : vector<8x1xi32>
      %c0_18 = arith.constant 0 : index
      %c0_19 = arith.constant 0 : index
      %c0_20 = arith.constant 0 : index
      %22 = vector.load %arg3[%c0_18, %c0_19, %c0_20] : memref<1x1x32xf32, #tpu.memory_space<vmem>>, vector<1x1x32xf32>
      %23 = vector.shape_cast %22 : vector<1x1x32xf32> to vector<1x32xf32>
      %c0_i32_21 = arith.constant 0 : i32
      %24 = vector.broadcast %c0_i32_21 : i32 to vector<8x1xi32>
      %25 = arith.cmpi eq, %21, %24 : vector<8x1xi32>
      %26 = vector.shape_cast %25 : vector<8x1xi1> to vector<8x1xi1>
      %27 = vector.broadcast %26 : vector<8x1xi1> to vector<8x32xi1>
      %28 = vector.shape_cast %23 : vector<1x32xf32> to vector<1x32xf32>
      %29 = vector.broadcast %28 : vector<1x32xf32> to vector<8x32xf32>
      %30 = arith.select %27, %29, %20 : vector<8x32xi1>, vector<8x32xf32>
      %c0_22 = arith.constant 0 : index
      %c0_23 = arith.constant 0 : index
      %31 = vector.load %arg4[%c0_22, %c0_23] : memref<8x1xf32, #tpu.memory_space<vmem>>, vector<8x1xf32>
      %32 = vector.broadcast %31 : vector<8x1xf32> to vector<8x32xf32>
      %33 = arith.mulf %30, %32 : vector<8x32xf32>
      %34 = vector.broadcast %18 : vector<1x32xf32> to vector<8x32xf32>
      %35 = arith.mulf %33, %34 : vector<8x32xf32>
      %36 = arith.addf %19, %35 : vector<8x32xf32>
      %37 = arith.truncf %36 : vector<8x32xf32> to vector<8x32xbf16>
      %c0_24 = arith.constant 0 : index
      %c0_25 = arith.constant 0 : index
      %38 = vector.load %arg11[%c0_24, %c0_25] : memref<8x32xbf16, #tpu.memory_space<vmem>>, vector<8x32xbf16>
      tpu.vector_store %arg11[%c0_24, %c0_25], %37 {strides = array<i32>} : memref<8x32xbf16, #tpu.memory_space<vmem>>, vector<8x32xbf16>,
      %cst_26 = arith.constant 0.000000e+00 : f32
      %39 = vector.broadcast %cst_26 : f32 to vector<8x32xf32>
      %c0_27 = arith.constant 0 : index
      %c0_28 = arith.constant 0 : index
      %40 = vector.load %arg10[%c0_27, %c0_28] : memref<8x32xf32, #tpu.memory_space<vmem>>, vector<8x32xf32>
      tpu.vector_store %arg10[%c0_27, %c0_28], %39 {strides = array<i32>} : memref<8x32xf32, #tpu.memory_space<vmem>>, vector<8x32xf32>,
    } else {
    }
    %c0 = arith.constant 0 : index
    %c0_1 = arith.constant 0 : index
    %3 = vector.load %arg11[%c0, %c0_1] : memref<8x32xbf16, #tpu.memory_space<vmem>>, vector<8x32xbf16>
    %c0_2 = arith.constant 0 : index
    %c0_3 = arith.constant 0 : index
    %4 = vector.load %arg7[%c0_2, %c0_3] : memref<32x128xbf16, #tpu.memory_space<vmem>>, vector<32x128xbf16>
    %cst = arith.constant dense<0.000000e+00> : vector<8x128xf32>
    %5 = tpu.matmul %3, %4, %cst {dimension_numbers = #tpu.dot_dimension_numbers<[1], [0], [0], [1], [0, 0, 1, 1], [], []>} : vector<8x32xbf16>, vector<32x128xbf16>, vector<8x128xf32> -> vector<8x128xf32>
    %cst_4 = arith.constant 0.000000e+00 : f32
    %6 = vector.broadcast %cst_4 : f32 to vector<8x128xf32>
    %7 = arith.maximumf %5, %6 : vector<8x128xf32>
    %8 = arith.mulf %7, %7 : vector<8x128xf32>
    %9 = arith.truncf %8 : vector<8x128xf32> to vector<8x128xbf16>
    %c0_5 = arith.constant 0 : index
    %c0_6 = arith.constant 0 : index
    %10 = vector.load %arg10[%c0_5, %c0_6] : memref<8x32xf32, #tpu.memory_space<vmem>>, vector<8x32xf32>
    %c0_7 = arith.constant 0 : index
    %c0_8 = arith.constant 0 : index
    %11 = vector.load %arg8[%c0_7, %c0_8] : memref<128x32xbf16, #tpu.memory_space<vmem>>, vector<128x32xbf16>
    %cst_9 = arith.constant dense<0.000000e+00> : vector<8x32xf32>
    %12 = tpu.matmul %9, %11, %cst_9 {dimension_numbers = #tpu.dot_dimension_numbers<[1], [0], [0], [1], [0, 0, 1, 1], [], []>} : vector<8x128xbf16>, vector<128x32xbf16>, vector<8x32xf32> -> vector<8x32xf32>
    %13 = arith.addf %10, %12 : vector<8x32xf32>
    %c0_10 = arith.constant 0 : index
    %c0_11 = arith.constant 0 : index
    %14 = vector.load %arg10[%c0_10, %c0_11] : memref<8x32xf32, #tpu.memory_space<vmem>>, vector<8x32xf32>
    tpu.vector_store %arg10[%c0_10, %c0_11], %13 {strides = array<i32>} : memref<8x32xf32, #tpu.memory_space<vmem>>, vector<8x32xf32>,
    %c1_i32 = arith.constant 1 : i32
    %15 = arith.cmpi eq, %arg1, %c1_i32 : i32
    %16 = arith.extui %15 : i1 to i32
    %c0_i32_12 = arith.constant 0 : i32
    %17 = arith.cmpi ne, %16, %c0_i32_12 : i32
    scf.if %17 {
      %c0_13 = arith.constant 0 : index
      %c0_14 = arith.constant 0 : index
      %18 = vector.load %arg6[%c0_13, %c0_14] : memref<1x32xf32, #tpu.memory_space<vmem>>, vector<1x32xf32>
      %c0_15 = arith.constant 0 : index
      %c0_16 = arith.constant 0 : index
      %19 = vector.load %arg2[%c0_15, %c0_16] : memref<8x32xf32, #tpu.memory_space<vmem>>, vector<8x32xf32>
      %c1_i32_17 = arith.constant 1 : i32
      %20 = tpu.dynamic_rotate %19 by %c1_i32_17 dim 0 : vector<8x32xf32>, i32 -> vector<8x32xf32>
      %21 = tpu.iota {dimensions = array<i32: 0>} : vector<8x1xi32>
      %c0_18 = arith.constant 0 : index
      %c0_19 = arith.constant 0 : index
      %c0_20 = arith.constant 0 : index
      %22 = vector.load %arg3[%c0_18, %c0_19, %c0_20] : memref<1x1x32xf32, #tpu.memory_space<vmem>>, vector<1x1x32xf32>
      %23 = vector.shape_cast %22 : vector<1x1x32xf32> to vector<1x32xf32>
      %c0_i32_21 = arith.constant 0 : i32
      %24 = vector.broadcast %c0_i32_21 : i32 to vector<8x1xi32>
      %25 = arith.cmpi eq, %21, %24 : vector<8x1xi32>
      %26 = vector.shape_cast %25 : vector<8x1xi1> to vector<8x1xi1>
      %27 = vector.broadcast %26 : vector<8x1xi1> to vector<8x32xi1>
      %28 = vector.shape_cast %23 : vector<1x32xf32> to vector<1x32xf32>
      %29 = vector.broadcast %28 : vector<1x32xf32> to vector<8x32xf32>
      %30 = arith.select %27, %29, %20 : vector<8x32xi1>, vector<8x32xf32>
      %c0_22 = arith.constant 0 : index
      %c0_23 = arith.constant 0 : index
      %31 = vector.load %arg4[%c0_22, %c0_23] : memref<8x1xf32, #tpu.memory_space<vmem>>, vector<8x1xf32>
      %32 = vector.broadcast %31 : vector<8x1xf32> to vector<8x32xf32>
      %33 = arith.mulf %30, %32 : vector<8x32xf32>
      %34 = vector.broadcast %18 : vector<1x32xf32> to vector<8x32xf32>
      %35 = arith.mulf %33, %34 : vector<8x32xf32>
      %36 = arith.addf %19, %35 : vector<8x32xf32>
      %37 = arith.truncf %36 : vector<8x32xf32> to vector<8x32xbf16>
      %c0_24 = arith.constant 0 : index
      %c0_25 = arith.constant 0 : index
      %38 = vector.load %arg9[%c0_24, %c0_25] : memref<32x32xbf16, #tpu.memory_space<vmem>>, vector<32x32xbf16>
      %cst_26 = arith.constant dense<0.000000e+00> : vector<8x32xf32>
      %39 = tpu.matmul %37, %38, %cst_26 {dimension_numbers = #tpu.dot_dimension_numbers<[1], [0], [0], [1], [0, 0, 1, 1], [], []>} : vector<8x32xbf16>, vector<32x32xbf16>, vector<8x32xf32> -> vector<8x32xf32>
      %40 = arith.negf %39 : vector<8x32xf32>
      %41 = math.exp %40 : vector<8x32xf32>
      %cst_27 = arith.constant 1.000000e+00 : f32
      %42 = vector.broadcast %cst_27 : f32 to vector<8x32xf32>
      %43 = arith.addf %42, %41 : vector<8x32xf32>
      %44 = arith.divf %42, %43 : vector<8x32xf32>
      %c0_28 = arith.constant 0 : index
      %c0_29 = arith.constant 0 : index
      %45 = vector.load %arg10[%c0_28, %c0_29] : memref<8x32xf32, #tpu.memory_space<vmem>>, vector<8x32xf32>
      %46 = arith.mulf %44, %45 : vector<8x32xf32>
      %c0_30 = arith.constant 0 : index
      %c0_31 = arith.constant 0 : index
      %47 = vector.load %arg10[%c0_30, %c0_31] : memref<8x32xf32, #tpu.memory_space<vmem>>, vector<8x32xf32>
      tpu.vector_store %arg10[%c0_30, %c0_31], %46 {strides = array<i32>} : memref<8x32xf32, #tpu.memory_space<vmem>>, vector<8x32xf32>,
    } else {
    }
    return
  }
  func.func @transform_0(%arg0: i32, %arg1: i32) -> (i32, i32) {
    %c0_i32 = arith.constant 0 : i32
    %c0_i32_0 = arith.constant 0 : i32
    return %arg0, %c0_i32 : i32, i32
  }
  func.func @transform_1(%arg0: i32, %arg1: i32) -> (i32, i32, i32) {
    %c0_i32 = arith.constant 0 : i32
    %c0_i32_0 = arith.constant 0 : i32
    %c0_i32_1 = arith.constant 0 : i32
    return %arg0, %c0_i32, %c0_i32_0 : i32, i32, i32
  }
  func.func @transform_2(%arg0: i32, %arg1: i32) -> (i32, i32) {
    %c0_i32 = arith.constant 0 : i32
    %c0_i32_0 = arith.constant 0 : i32
    return %arg0, %c0_i32 : i32, i32
  }
  func.func @transform_3(%arg0: i32, %arg1: i32) -> (i32, i32) {
    %c0_i32 = arith.constant 0 : i32
    %c0_i32_0 = arith.constant 0 : i32
    %c0_i32_1 = arith.constant 0 : i32
    return %c0_i32, %c0_i32_0 : i32, i32
  }
  func.func @transform_4(%arg0: i32, %arg1: i32) -> (i32, i32) {
    %c0_i32 = arith.constant 0 : i32
    %c0_i32_0 = arith.constant 0 : i32
    %c0_i32_1 = arith.constant 0 : i32
    return %c0_i32, %c0_i32_0 : i32, i32
  }
  func.func @transform_5(%arg0: i32, %arg1: i32) -> (i32, i32) {
    %c0_i32 = arith.constant 0 : i32
    %c0_i32_0 = arith.constant 0 : i32
    return %c0_i32, %arg1 : i32, i32
  }
  func.func @transform_6(%arg0: i32, %arg1: i32) -> (i32, i32) {
    %c0_i32 = arith.constant 0 : i32
    %c0_i32_0 = arith.constant 0 : i32
    return %arg1, %c0_i32 : i32, i32
  }
  func.func @transform_7(%arg0: i32, %arg1: i32) -> (i32, i32) {
    %c0_i32 = arith.constant 0 : i32
    %c0_i32_0 = arith.constant 0 : i32
    %c0_i32_1 = arith.constant 0 : i32
    return %c0_i32, %c0_i32_0 : i32, i32
  }
  func.func @transform_8(%arg0: i32, %arg1: i32) -> (i32, i32) {
    %c0_i32 = arith.constant 0 : i32
    %c0_i32_0 = arith.constant 0 : i32
    return %arg0, %c0_i32 : i32, i32
  }
}

</mosaic_0001>

<llo_original>
// kernel: tpu_custom_call.1
$region0: #{tpu_custom_call.1}
  #allocation0 [shape = 'u32[]', space=smem, size = 0x4, offset = 0x4, fixed_abs, tag = 'smem constant byte address 0x4 - core index']
  #allocation1 [shape = 'u32[144,128]{1,0:T(1,128)}', space=vmem, size = 0x12000, scoped, tag = 'internal scratch']
  #allocation2 [shape = 'bf16[8,32]{1,0:T(8,128)(2,1)}', space=vmem, size = 0x800, scoped, tag = 'scratch operand']
  %s0 = inlined_call_operand.vmem [shape: f32[32,32], index: 0, kind: input, shape index: {}]
  %s1 = inlined_call_operand.vmem [shape: f32[4,1,32], index: 1, kind: input, shape index: {}]
  %s2 = inlined_call_operand.vmem [shape: f32[32,1], index: 2, kind: input, shape index: {}]
  %s3 = inlined_call_operand.vmem [shape: f32[1,32], index: 3, kind: input, shape index: {}]
  %s4 = inlined_call_operand.vmem [shape: f32[1,32], index: 4, kind: input, shape index: {}]
  %s5 = inlined_call_operand.vmem [shape: bf16[32,256], index: 5, kind: input, shape index: {}]
  %s6 = inlined_call_operand.vmem [shape: bf16[256,32], index: 6, kind: input, shape index: {}]
  %s7 = inlined_call_operand.vmem [shape: bf16[32,32], index: 7, kind: input, shape index: {}]
  %s8 = inlined_call_operand.hbm [shape: f32[32,32], index: 8, kind: output, shape index: {}]
  %s9 = sld [smem:[#allocation0]]
  $region114: #{tpu_custom_call.1} parent=0
    _
  %s11 = ssub.s32 1, %s9
  %s12 = scalar_select 0, %s11, %s9
  $region1: #{tpu_custom_call.1} parent=0
    #allocation3 [shape = 'u8[16384]{0}', space=vmem, size = 0x4000, scoped, tag = 'input window, operand 5']
    #allocation4 [shape = 'u8[8192]{0}', space=vmem, size = 0x2000, scoped, tag = 'output window, operand 0']
    #allocation5 [shape = 's32[2]{0}', space=sflag, size = 0x8, scoped, tag = 'scoped memory for tpu_custom_call.1']
    %13 = vsyncpa [#allocation5], 0
    %s14 = scalar_lea.sflag [#allocation5], 1
    %15 = vsyncpa %s14, 0
    loop: start=0, step=1, limit=10
    $region2: #{tpu_custom_call.1} parent=1 // loop_pre_header
      _
    $region3: #{tpu_custom_call.1} parent=1 // loop_header
      %s17 = sphi 0, %s21
      %p18 = scmp.ge.s32.totalorder %s17, 10
      %s24 = sphi 0, %s36
      %s25 = sphi 0, %s32
      %s26 = sphi 0, %s24
      %s27 = sphi 0, %s25
      %s28 = sphi 0, %s26
      %s29 = sphi 0, %s27
      %s39 = sphi 0, %s41
      %s42 = sphi 0, %s39
      %s43 = sphi 0, %s42
      %s59 = sphi 0, %s43
      %s65 = sphi 0, %s67
      %s68 = sphi 0, %s65
      %s69 = sphi 0, %s68
      %s85 = sphi 0, %s69
      %s91 = sphi 0, %s93
      %s94 = sphi 0, %s91
      %s95 = sphi 0, %s94
      %s111 = sphi 0, %s95
      %s115 = sphi 0, %s115
      %s117 = sphi 0, %s115
      %s118 = sphi 0, %s117
      %s132 = sphi 0, %s118
      %s136 = sphi 0, %s136
      %s138 = sphi 0, %s136
      %s139 = sphi 0, %s138
      %s153 = sphi 0, %s139
      %s159 = sphi 0, %s161
      %s162 = sphi 0, %s159
      %s163 = sphi 0, %s162
      %s179 = sphi 0, %s163
      %s185 = sphi 0, %s187
      %s188 = sphi 0, %s185
      %s189 = sphi 0, %s188
      %s205 = sphi 0, %s189
      %s209 = sphi 0, %s209
      %s211 = sphi 0, %s209
      %s212 = sphi 0, %s211
      %s226 = sphi 0, %s212
      %s232 = sphi 0, %s234
      %s235 = sphi 0, %s232
      %s236 = sphi 0, %s235
      %s252 = sphi 0, %s236
    $region4: #{tpu_custom_call.1} parent=1 // loop_header_branch
      %20 = sbr.rel (%p18) target = $region8
    $region5: #{tpu_custom_call.1} parent=1 // loop_body
      %s22 = ssub.s32 %s17, 1
      %s23 = ssub.s32 %s17, 2
      %s30 = sadd.s32 1, %s25
      %p31 = scmp.ge.s32.totalorder %s30, 2
      %s32 = scalar_select %p31, 0, %s30
      %s33 = sadd.s32 1, %s24
      %s34 = scalar_select %p31, %s33, %s24
      %p35 = scmp.ge.s32.totalorder %s34, 4
      %s36 = scalar_select %p35, 0, %s34
      %s37 = ssub.s32 %s24, %s36
      %p38 = scmp.eq.s32.totalorder %s37, 0
      %s40 = sadd.s32 %s39, 1
      %s41 = scalar_select %p38, %s39, %s40
      %p44 = pneg %p38
      %p45 = scmp.eq.s32.totalorder %s17, 7
      %p46 = por %p44, %p45
      %p47 = scmp.ne.s32.totalorder %s39, %s42
      %p48 = scmp.eq.s32.totalorder %s17, 0
      %p49 = por %p47, %p48
      %p50 = scmp.ne.s32.totalorder %s39, %s42
      %p51 = scmp.eq.s32.totalorder %s22, 7
      %p52 = por %p50, %p51
      %p53 = scmp.ne.s32.totalorder %s42, %s43
      %p54 = scmp.eq.s32.totalorder %s22, 0
      %p55 = por %p53, %p54
      %p56 = scmp.ne.s32.totalorder %s42, %s43
      %p57 = scmp.eq.s32.totalorder %s23, 7
      %p58 = por %p56, %p57
      %p60 = scmp.ne.s32.totalorder %s43, %s59
      %p61 = scmp.eq.s32.totalorder %s23, 0
      %p62 = por %p60, %p61
      %s63 = ssub.s32 %s24, %s36
      %p64 = scmp.eq.s32.totalorder %s63, 0
      %s66 = sadd.s32 %s65, 1
      %s67 = scalar_select %p64, %s65, %s66
      %p70 = pneg %p64
      %p71 = scmp.eq.s32.totalorder %s17, 7
      %p72 = por %p70, %p71
      %p73 = scmp.ne.s32.totalorder %s65, %s68
      %p74 = scmp.eq.s32.totalorder %s17, 0
      %p75 = por %p73, %p74
      %p76 = scmp.ne.s32.totalorder %s65, %s68
      %p77 = scmp.eq.s32.totalorder %s22, 7
      %p78 = por %p76, %p77
      %p79 = scmp.ne.s32.totalorder %s68, %s69
      %p80 = scmp.eq.s32.totalorder %s22, 0
      %p81 = por %p79, %p80
      %p82 = scmp.ne.s32.totalorder %s68, %s69
      %p83 = scmp.eq.s32.totalorder %s23, 7
      %p84 = por %p82, %p83
      %p86 = scmp.ne.s32.totalorder %s69, %s85
      %p87 = scmp.eq.s32.totalorder %s23, 0
      %p88 = por %p86, %p87
      %s89 = ssub.s32 %s24, %s36
      %p90 = scmp.eq.s32.totalorder %s89, 0
      %s92 = sadd.s32 %s91, 1
      %s93 = scalar_select %p90, %s91, %s92
      %p96 = pneg %p90
      %p97 = scmp.eq.s32.totalorder %s17, 7
      %p98 = por %p96, %p97
      %p99 = scmp.ne.s32.totalorder %s91, %s94
      %p100 = scmp.eq.s32.totalorder %s17, 0
      %p101 = por %p99, %p100
      %p102 = scmp.ne.s32.totalorder %s91, %s94
      %p103 = scmp.eq.s32.totalorder %s22, 7
      %p104 = por %p102, %p103
      %p105 = scmp.ne.s32.totalorder %s94, %s95
      %p106 = scmp.eq.s32.totalorder %s22, 0
      %p107 = por %p105, %p106
      %p108 = scmp.ne.s32.totalorder %s94, %s95
      %p109 = scmp.eq.s32.totalorder %s23, 7
      %p110 = por %p108, %p109
      %p112 = scmp.ne.s32.totalorder %s95, %s111
      %p113 = scmp.eq.s32.totalorder %s23, 0
      %p114 = por %p112, %p113
      %s116 = sadd.s32 %s115, 1
      %p119 = scmp.eq.s32.totalorder %s17, 7
      %p120 = scmp.ne.s32.totalorder %s115, %s117
      %p121 = scmp.eq.s32.totalorder %s17, 0
      %p122 = por %p120, %p121
      %p123 = scmp.ne.s32.totalorder %s115, %s117
      %p124 = scmp.eq.s32.totalorder %s22, 7
      %p125 = por %p123, %p124
      %p126 = scmp.ne.s32.totalorder %s117, %s118
      %p127 = scmp.eq.s32.totalorder %s22, 0
      %p128 = por %p126, %p127
      %p129 = scmp.ne.s32.totalorder %s117, %s118
      %p130 = scmp.eq.s32.totalorder %s23, 7
      %p131 = por %p129, %p130
      %p133 = scmp.ne.s32.totalorder %s118, %s132
      %p134 = scmp.eq.s32.totalorder %s23, 0
      %p135 = por %p133, %p134
      %s137 = sadd.s32 %s136, 1
      %p140 = scmp.eq.s32.totalorder %s17, 7
      %p141 = scmp.ne.s32.totalorder %s136, %s138
      %p142 = scmp.eq.s32.totalorder %s17, 0
      %p143 = por %p141, %p142
      %p144 = scmp.ne.s32.totalorder %s136, %s138
      %p145 = scmp.eq.s32.totalorder %s22, 7
      %p146 = por %p144, %p145
      %p147 = scmp.ne.s32.totalorder %s138, %s139
      %p148 = scmp.eq.s32.totalorder %s22, 0
      %p149 = por %p147, %p148
      %p150 = scmp.ne.s32.totalorder %s138, %s139
      %p151 = scmp.eq.s32.totalorder %s23, 7
      %p152 = por %p150, %p151
      %p154 = scmp.ne.s32.totalorder %s139, %s153
      %p155 = scmp.eq.s32.totalorder %s23, 0
      %p156 = por %p154, %p155
      %s157 = ssub.s32 %s25, %s32
      %p158 = scmp.eq.s32.totalorder %s157, 0
      %s160 = sadd.s32 %s159, 1
      %s161 = scalar_select %p158, %s159, %s160
      %p164 = pneg %p158
      %p165 = scmp.eq.s32.totalorder %s17, 7
      %p166 = por %p164, %p165
      %p167 = scmp.ne.s32.totalorder %s159, %s162
      %p168 = scmp.eq.s32.totalorder %s17, 0
      %p169 = por %p167, %p168
      %p170 = scmp.ne.s32.totalorder %s159, %s162
      %p171 = scmp.eq.s32.totalorder %s22, 7
      %p172 = por %p170, %p171
      %p173 = scmp.ne.s32.totalorder %s162, %s163
      %p174 = scmp.eq.s32.totalorder %s22, 0
      %p175 = por %p173, %p174
      %p176 = scmp.ne.s32.totalorder %s162, %s163
      %p177 = scmp.eq.s32.totalorder %s23, 7
      %p178 = por %p176, %p177
      %p180 = scmp.ne.s32.totalorder %s163, %s179
      %p181 = scmp.eq.s32.totalorder %s23, 0
      %p182 = por %p180, %p181
      %s183 = ssub.s32 %s25, %s32
      %p184 = scmp.eq.s32.totalorder %s183, 0
      %s186 = sadd.s32 %s185, 1
      %s187 = scalar_select %p184, %s185, %s186
      %p190 = pneg %p184
      %p191 = scmp.eq.s32.totalorder %s17, 7
      %p192 = por %p190, %p191
      %p193 = scmp.ne.s32.totalorder %s185, %s188
      %p194 = scmp.eq.s32.totalorder %s17, 0
      %p195 = por %p193, %p194
      %p196 = scmp.ne.s32.totalorder %s185, %s188
      %p197 = scmp.eq.s32.totalorder %s22, 7
      %p198 = por %p196, %p197
      %p199 = scmp.ne.s32.totalorder %s188, %s189
      %p200 = scmp.eq.s32.totalorder %s22, 0
      %p201 = por %p199, %p200
      %p202 = scmp.ne.s32.totalorder %s188, %s189
      %p203 = scmp.eq.s32.totalorder %s23, 7
      %p204 = por %p202, %p203
      %p206 = scmp.ne.s32.totalorder %s189, %s205
      %p207 = scmp.eq.s32.totalorder %s23, 0
      %p208 = por %p206, %p207
      %s210 = sadd.s32 %s209, 1
      %p213 = scmp.eq.s32.totalorder %s17, 7
      %p214 = scmp.ne.s32.totalorder %s209, %s211
      %p215 = scmp.eq.s32.totalorder %s17, 0
      %p216 = por %p214, %p215
      %p217 = scmp.ne.s32.totalorder %s209, %s211
      %p218 = scmp.eq.s32.totalorder %s22, 7
      %p219 = por %p217, %p218
      %p220 = scmp.ne.s32.totalorder %s211, %s212
      %p221 = scmp.eq.s32.totalorder %s22, 0
      %p222 = por %p220, %p221
      %p223 = scmp.ne.s32.totalorder %s211, %s212
      %p224 = scmp.eq.s32.totalorder %s23, 7
      %p225 = por %p223, %p224
      %p227 = scmp.ne.s32.totalorder %s212, %s226
      %p228 = scmp.eq.s32.totalorder %s23, 0
      %p229 = por %p227, %p228
      %s230 = ssub.s32 %s24, %s36
      %p231 = scmp.eq.s32.totalorder %s230, 0
      %s233 = sadd.s32 %s232, 1
      %s234 = scalar_select %p231, %s232, %s233
      %p237 = pneg %p231
      %p238 = scmp.eq.s32.totalorder %s17, 7
      %p239 = por %p237, %p238
      %p240 = scmp.ne.s32.totalorder %s232, %s235
      %p241 = scmp.eq.s32.totalorder %s17, 0
      %p242 = por %p240, %p241
      %p243 = scmp.ne.s32.totalorder %s232, %s235
      %p244 = scmp.eq.s32.totalorder %s22, 7
      %p245 = por %p243, %p244
      %p246 = scmp.ne.s32.totalorder %s235, %s236
      %p247 = scmp.eq.s32.totalorder %s22, 0
      %p248 = por %p246, %p247
      %p249 = scmp.ne.s32.totalorder %s235, %s236
      %p250 = scmp.eq.s32.totalorder %s23, 7
      %p251 = por %p249, %p250
      %p253 = scmp.ne.s32.totalorder %s236, %s252
      %p254 = scmp.eq.s32.totalorder %s23, 0
      %p255 = por %p253, %p254
      %p256 = scmp.le.s32.totalorder 1, %s17
      %p257 = scmp.lt.s32.totalorder %s17, 9
      %p258 = pnand %p256, %p257
      %p259 = pneg %p258
      // Predicated region
      $region9: #{tpu_custom_call.1} parent=5 // pred_check
        _
      $region10: #{tpu_custom_call.1} parent=5 // pred_check_branch
        %261 = sbr.rel (%p258) target = $region12
      $region11: #{tpu_custom_call.1} parent=5 // pred_region
        %s262 = ssub.s32 %s17, 1
        // Predicated region
        $region13: #{tpu_custom_call.1} parent=11 // pred_check
          %p263 = pneg %p128
        $region14: #{tpu_custom_call.1} parent=11 // pred_check_branch
          %265 = sbr.rel (%p263) target = $region16
        $region15: #{tpu_custom_call.1} parent=11 // pred_region
          _
        $region16: #{tpu_custom_call.1} parent=11 // pred_fallthru
          _
        // Predicated region
        $region17: #{tpu_custom_call.1} parent=11 // pred_check
          %p266 = pneg %p149
        $region18: #{tpu_custom_call.1} parent=11 // pred_check_branch
          %268 = sbr.rel (%p266) target = $region20
        $region19: #{tpu_custom_call.1} parent=11 // pred_region
          _
        $region20: #{tpu_custom_call.1} parent=11 // pred_fallthru
          _
        // Predicated region
        $region21: #{tpu_custom_call.1} parent=11 // pred_check
          %p269 = pneg %p222
        $region22: #{tpu_custom_call.1} parent=11 // pred_check_branch
          %271 = sbr.rel (%p269) target = $region24
        $region23: #{tpu_custom_call.1} parent=11 // pred_region
          _
        $region24: #{tpu_custom_call.1} parent=11 // pred_fallthru
          _
      $region12: #{tpu_custom_call.1} parent=5 // pred_fallthru
        _
      %p272 = scmp.lt.s32.totalorder %s17, 8
      // Predicated region
      $region25: #{tpu_custom_call.1} parent=5 // pred_check
        %p273 = pneg %p272
      $region26: #{tpu_custom_call.1} parent=5 // pred_check_branch
        %275 = sbr.rel (%p273) target = $region28
      $region27: #{tpu_custom_call.1} parent=5 // pred_region
        // Predicated region
        $region29: #{tpu_custom_call.1} parent=27 // pred_check
          %p276 = pneg %p49
        $region30: #{tpu_custom_call.1} parent=27 // pred_check_branch
          %278 = sbr.rel (%p276) target = $region32
        $region31: #{tpu_custom_call.1} parent=27 // pred_region
          %p279 = scmp.lt.s32.totalorder %s24, 3
          %s280 = scalar_select %p279, %s24, 3
          %s281 = smul.addr %s280, 8
          %s282 = scalar_lea.vmem %s0, %s281
        $region32: #{tpu_custom_call.1} parent=27 // pred_fallthru
          _
        // Predicated region
        $region33: #{tpu_custom_call.1} parent=27 // pred_check
          %p283 = pneg %p75
        $region34: #{tpu_custom_call.1} parent=27 // pred_check_branch
          %285 = sbr.rel (%p283) target = $region36
        $region35: #{tpu_custom_call.1} parent=27 // pred_region
          %p286 = scmp.lt.s32.totalorder %s24, 3
          %s287 = scalar_select %p286, %s24, 3
          %s288 = scalar_lea.vmem %s1, %s287
        $region36: #{tpu_custom_call.1} parent=27 // pred_fallthru
          _
        // Predicated region
        $region37: #{tpu_custom_call.1} parent=27 // pred_check
          %p289 = pneg %p101
        $region38: #{tpu_custom_call.1} parent=27 // pred_check_branch
          %291 = sbr.rel (%p289) target = $region40
        $region39: #{tpu_custom_call.1} parent=27 // pred_region
          %p292 = scmp.lt.s32.totalorder %s24, 3
          %s293 = scalar_select %p292, %s24, 3
          %s294 = smul.addr %s293, 8
          %s295 = scalar_lea.vmem %s2, %s294
        $region40: #{tpu_custom_call.1} parent=27 // pred_fallthru
          _
        // Predicated region
        $region41: #{tpu_custom_call.1} parent=27 // pred_check
          %p296 = pneg %p169
        $region42: #{tpu_custom_call.1} parent=27 // pred_check_branch
          %298 = sbr.rel (%p296) target = $region44
        $region43: #{tpu_custom_call.1} parent=27 // pred_region
          %s299 = sand.u32 %s159, 1
          %s300 = sand.u32 %s159, 1
          %s301 = smul.addr %s300, 16
          %s302 = scalar_lea.vmem [#allocation3], %s301
          %s303 = smul.addr %s25, 4
          %s304 = scalar_lea.vmem %s5, %s303
          // Predicated region
          $region45: #{tpu_custom_call.1} parent=43 // pred_check
            _
          $region46: #{tpu_custom_call.1} parent=43 // pred_check_branch
            %306 = sbr.rel (0) target = $region48
          $region47: #{tpu_custom_call.1} parent=43 // pred_region
            // Predicated region
            $region49: #{tpu_custom_call.1} parent=47 // pred_check
              _
            $region50: #{tpu_custom_call.1} parent=47 // pred_check_branch
              %308 = sbr.rel target = $region52
            $region51: #{tpu_custom_call.1} parent=47 // pred_region
              // Predicated region
              $region64: #{tpu_custom_call.1} parent=51 // pred_check
                _
              $region65: #{tpu_custom_call.1} parent=51 // pred_check_branch
                %329 = sbr.rel (0) target = $region67
              $region66: #{tpu_custom_call.1} parent=51 // pred_region
                loop: start=0, step=1, limit=1
                $region68: #{tpu_custom_call.1} parent=66 // loop_pre_header
                  _
                $region69: #{tpu_custom_call.1} parent=66 // loop_header
                  %s331 = sphi 0, %s335
                  %p332 = scmp.ge.s32.totalorder %s331, 1
                  %s336 = sphi %s304, %s304
                  %s337 = sphi %s302, %s302
                $region70: #{tpu_custom_call.1} parent=66 // loop_header_branch
                  %334 = sbr.rel (%p332) target = $region74
                $region71: #{tpu_custom_call.1} parent=66 // loop_body
                  _
                $region72: #{tpu_custom_call.1} parent=66 // loop_footer
                  %s335 = sadd.s32 1, %s331
                $region73: #{tpu_custom_call.1} parent=66 // loop_footer_branch
                  %330 = sbr.rel target = $region69
                $region74: #{tpu_custom_call.1} parent=66 // loop_exit
                  _
                loop: start=0, step=1, limit=1
                $region75: #{tpu_custom_call.1} parent=66 // loop_pre_header
                  _
                $region76: #{tpu_custom_call.1} parent=66 // loop_header
                  %s340 = sphi 0, %s344
                  %p341 = scmp.ge.s32.totalorder %s340, 1
                  %s345 = sphi %s304, %s304
                  %s346 = sphi %s302, %s302
                $region77: #{tpu_custom_call.1} parent=66 // loop_header_branch
                  %343 = sbr.rel (%p341) target = $region81
                $region78: #{tpu_custom_call.1} parent=66 // loop_body
                  %v347 = vld [vmem:[%s345] sm:$0xf]
                  %348 = vst [vmem:[%s346] sm:$0xf] %v347
                  %v349 = vld [vmem:[%s345 + $0x8] sm:$0xf]
                  %350 = vst [vmem:[%s346 + $0x4] sm:$0xf] %v349
                  %v351 = vld [vmem:[%s345 + $0x10] sm:$0xf]
                  %352 = vst [vmem:[%s346 + $0x8] sm:$0xf] %v351
                  %v353 = vld [vmem:[%s345 + $0x18] sm:$0xf]
                  %354 = vst [vmem:[%s346 + $0xc] sm:$0xf] %v353
                $region79: #{tpu_custom_call.1} parent=66 // loop_footer
                  %s344 = sadd.s32 1, %s340
                $region80: #{tpu_custom_call.1} parent=66 // loop_footer_branch
                  %339 = sbr.rel target = $region76
                $region81: #{tpu_custom_call.1} parent=66 // loop_exit
                  _
              $region67: #{tpu_custom_call.1} parent=51 // pred_fallthru
                _
            $region52: #{tpu_custom_call.1} parent=47 // pred_fallthru
              _
            // Predicated region
            $region53: #{tpu_custom_call.1} parent=47 // pred_check
              _
            $region54: #{tpu_custom_call.1} parent=47 // pred_check_branch
              %310 = sbr.rel (0) target = $region56
            $region55: #{tpu_custom_call.1} parent=47 // pred_region
              loop: start=0, step=1, limit=1
              $region57: #{tpu_custom_call.1} parent=55 // loop_pre_header
                _
              $region58: #{tpu_custom_call.1} parent=55 // loop_header
                %s313 = sphi 0, %s317
                %p314 = scmp.ge.s32.totalorder %s313, 1
                %s318 = sphi %s304, %s304
                %s319 = sphi %s302, %s302
              $region59: #{tpu_custom_call.1} parent=55 // loop_header_branch
                %316 = sbr.rel (%p314) target = $region63
              $region60: #{tpu_custom_call.1} parent=55 // loop_body
                %v320 = vld [vmem:[%s318] sm:$0xf]
                %321 = vst [vmem:[%s319] sm:$0xf] %v320
                %v322 = vld [vmem:[%s318 + $0x8] sm:$0xf]
                %323 = vst [vmem:[%s319 + $0x4] sm:$0xf] %v322
                %v324 = vld [vmem:[%s318 + $0x10] sm:$0xf]
                %325 = vst [vmem:[%s319 + $0x8] sm:$0xf] %v324
                %v326 = vld [vmem:[%s318 + $0x18] sm:$0xf]
                %327 = vst [vmem:[%s319 + $0xc] sm:$0xf] %v326
              $region61: #{tpu_custom_call.1} parent=55 // loop_footer
                %s317 = sadd.s32 1, %s313
              $region62: #{tpu_custom_call.1} parent=55 // loop_footer_branch
                %312 = sbr.rel target = $region58
              $region63: #{tpu_custom_call.1} parent=55 // loop_exit
                _
            $region56: #{tpu_custom_call.1} parent=47 // pred_fallthru
              _
          $region48: #{tpu_custom_call.1} parent=43 // pred_fallthru
            _
          %355 = vnop
        $region44: #{tpu_custom_call.1} parent=27 // pred_fallthru
          _
        // Predicated region
        $region82: #{tpu_custom_call.1} parent=27 // pred_check
          %p356 = pneg %p195
        $region83: #{tpu_custom_call.1} parent=27 // pred_check_branch
          %358 = sbr.rel (%p356) target = $region85
        $region84: #{tpu_custom_call.1} parent=27 // pred_region
          %s359 = smul.u32 16, %s25
          %p360 = scmp.lt.s32.totalorder %s359, 31
          %s361 = scalar_select %p360, %s359, 31
          %s362 = smul.addr %s361, 4
          %s363 = scalar_lea.vmem %s6, %s362
          %s364 = smul.u32 16, %s25
        $region85: #{tpu_custom_call.1} parent=27 // pred_fallthru
          _
      $region28: #{tpu_custom_call.1} parent=5 // pred_fallthru
        _
      %p365 = scmp.le.s32.totalorder 1, %s17
      %p366 = scmp.lt.s32.totalorder %s17, 9
      %p367 = pnand %p365, %p366
      %p368 = pneg %p367
      // Predicated region
      $region86: #{tpu_custom_call.1} parent=5 // pred_check
        _
      $region87: #{tpu_custom_call.1} parent=5 // pred_check_branch
        %370 = sbr.rel (%p367) target = $region89
      $region88: #{tpu_custom_call.1} parent=5 // pred_region
        %s371 = ssub.s32 %s17, 1
        %s372 = sand.u32 %s162, 1
        %s373 = sand.u32 %s162, 1
        %s374 = smul.addr %s373, 16
        %s375 = scalar_lea.vmem [#allocation3], %s374
        // Predicated region
        $region90: #{tpu_custom_call.1} parent=88 // pred_check
          %p376 = pneg %p175
        $region91: #{tpu_custom_call.1} parent=88 // pred_check_branch
          %378 = sbr.rel (%p376) target = $region93
        $region92: #{tpu_custom_call.1} parent=88 // pred_region
          _
        $region93: #{tpu_custom_call.1} parent=88 // pred_fallthru
          _
        %p379 = scmp.lt.s32.totalorder %s26, 3
        %s380 = scalar_select %p379, %s26, 3
        %s381 = smul.addr %s380, 8
        %s382 = scalar_lea.vmem %s0, %s381
        %p383 = pneg %p55
        %p384 = pneg %p52
        %p385 = scmp.lt.s32.totalorder %s26, 3
        %s386 = scalar_select %p385, %s26, 3
        %s387 = scalar_lea.vmem %s1, %s386
        %p388 = pneg %p81
        %p389 = pneg %p78
        %p390 = scmp.lt.s32.totalorder %s26, 3
        %s391 = scalar_select %p390, %s26, 3
        %s392 = smul.addr %s391, 8
        %s393 = scalar_lea.vmem %s2, %s392
        %p394 = pneg %p107
        %p395 = pneg %p104
        %p396 = pneg %p128
        %p397 = pneg %p125
        %p398 = pneg %p149
        %p399 = pneg %p146
        %s400 = sand.u32 %s162, 1
        %s401 = sand.u32 %s162, 1
        %s402 = smul.addr %s401, 16
        %s403 = scalar_lea.vmem [#allocation3], %s402
        %p404 = pneg %p175
        %p405 = pneg %p172
        %s406 = smul.u32 16, %s27
        %p407 = scmp.lt.s32.totalorder %s406, 31
        %s408 = scalar_select %p407, %s406, 31
        %s409 = smul.addr %s408, 4
        %s410 = scalar_lea.vmem %s6, %s409
        %p411 = pneg %p201
        %p412 = pneg %p198
        %p413 = pneg %p222
        %p414 = pneg %p219
        %p415 = pneg %p248
        %p416 = pneg %p245
        %s417 = sand.u32 %s235, 1
        %s418 = scalar_lea.sflag [#allocation5], %s417
        %s419 = sand.u32 %s235, 1
        %s420 = smul.addr %s419, 8
        %s421 = scalar_lea.vmem [#allocation4], %s420
        %p422 = scmp.lt.s32.totalorder %s26, 3
        %s423 = scalar_select %p422, %s26, 3
        %s424 = smul.addr %s423, 8
        %s425 = scalar_lea.vmem %s0, %s424
        %p426 = scmp.lt.s32.totalorder %s26, 3
        %s427 = scalar_select %p426, %s26, 3
        %s428 = scalar_lea.vmem %s1, %s427
        %p429 = scmp.lt.s32.totalorder %s26, 3
        %s430 = scalar_select %p429, %s26, 3
        %s431 = smul.addr %s430, 8
        %s432 = scalar_lea.vmem %s2, %s431
        %s433 = smul.u32 16, %s27
        %p434 = scmp.lt.s32.totalorder %s433, 31
        %s435 = scalar_select %p434, %s433, 31
        %s436 = smul.addr %s435, 4
        %s437 = scalar_lea.vmem %s6, %s436
        %s438 = smul.u32 16, %s27
        %p440 = scmp.eq.s32.totalorder %s27, 0
        // Predicated region
        $region94: #{tpu_custom_call.1} parent=88 // pred_check
          %p441 = pneg %p440
        $region95: #{tpu_custom_call.1} parent=88 // pred_check_branch
          %443 = sbr.rel (%p441) target = $region97
        $region96: #{tpu_custom_call.1} parent=88 // pred_region
          %v444 = vld [vmem:[%s3] sm:$0x1]
          %v445 = vld [vmem:[%s425] sm:$0xff]
          %v446 = vrot.slane %v445, 7
          %v447 = vlaneseq
          %v448 = vshrl.u32 %v447, 7
          %v449 = vld [vmem:[%s428] sm:$0x1]
          %vm450 = vcmp.eq.s32.totalorder %v448, 0
          %v451 = vsel %vm450, 1, 0
          %vm452 = vcmp.eq.s32.totalorder %v451, 1
          %v454 = vlaneseq
          %v455 = vshrl.u32 %v454, 7
          %v456 = vsub.s32 0, %v455
          %v457 = vrot.slane %v449, %v456
          %v459 = vsel %vm452, %v457, %v446
          %v460 = vld [vmem:[%s432] sm:$0xff]
          %462 = vset.pattern.permute.xlu0 0
          %463 = vperm.xlu0 %462, %v460
          %v464 = vpop.permute.xlu0 %463
          %v466 = vmul.f32 %v459, %v464
          %v468 = vlaneseq
          %v469 = vshrl.u32 %v468, 7
          %v470 = vsub.s32 0, %v469
          %v471 = vrot.slane %v444, %v470
          %v473 = vmul.f32 %v466, %v471
          %v474 = vadd.f32 %v445, %v473
          %v475 = vpack.c.bf16 %v474, %v474
          %vm476 = vcmask 257024
          %477 = vst.msk [vmem:[#allocation2] sm:$0xf] %vm476, %v475
          %vm478 = vcmask 261120
          %479 = vst.msk [vmem:[%s421] sm:$0xff] %vm478, 0.0
        $region97: #{tpu_custom_call.1} parent=88 // pred_fallthru
          _
        %v480 = vld [vmem:[#allocation2] sm:$0xf]
        %v481 = vld [vmem:[%s375] sm:$0xf]
        %v482 = vld [vmem:[%s375 + $0x4] sm:$0xf]
        %v483 = vld [vmem:[%s375 + $0x8] sm:$0xf]
        %v484 = vld [vmem:[%s375 + $0xc] sm:$0xf]
        %v489 = vunpack.c.l.b16 %v481
        %v490 = vunpack.c.l.b16 %v482
        %v491 = vunpack.c.l.b16 %v483
        %v492 = vunpack.c.l.b16 %v484
        %v493 = vpack.c.b16 %v490, %v489
        %v494 = vpack.c.b16 %v492, %v491
        %vm497 = vcmask 261120
        %v499 = vsel %vm497, %v480, 0
        %501 = vmatprep.subr.bf16.mxu0 0
        %502 = vmatpush1.bf16.msra.mxu0 %v493
        %503 = vmatprep.subr.bf16.mxu0 0
        %504 = vmatpush1.bf16.msra.mxu0 %v494
        %505 = vmatprep.subr.bf16.mxu0 0
        %506 = vmatpush1.bf16.msra.mxu0 0
        %507 = vmatprep.subr.bf16.mxu0 0
        %508 = vmatpush1.bf16.msra.mxu0 0
        %509 = vmatprep.subr.bf16.mxu0 0
        %510 = vmatpush1.bf16.msra.mxu0 0
        %511 = vmatprep.subr.bf16.mxu0 0
        %512 = vmatpush1.bf16.msra.mxu0 0
        %513 = vmatprep.subr.bf16.mxu0 0
        %514 = vmatpush1.bf16.msra.mxu0 0
        %515 = vmatprep.subr.bf16.mxu0 0
        %516 = vmatpush1.bf16.msra.mxu0 0
        %517 = vmatprep.subr.bf16.mxu0 0
        %518 = vmatpush1.bf16.msra.mxu0 0
        %519 = vmatprep.subr.bf16.mxu0 0
        %520 = vmatpush1.bf16.msra.mxu0 0
        %521 = vmatprep.subr.bf16.mxu0 0
        %522 = vmatpush1.bf16.msra.mxu0 0
        %523 = vmatprep.subr.bf16.mxu0 0
        %524 = vmatpush1.bf16.msra.mxu0 0
        %525 = vmatprep.subr.bf16.mxu0 0
        %526 = vmatpush1.bf16.msra.mxu0 0
        %527 = vmatprep.subr.bf16.mxu0 0
        %528 = vmatpush1.bf16.msra.mxu0 0
        %529 = vmatprep.subr.bf16.mxu0 0
        %530 = vmatpush1.bf16.msra.mxu0 0
        %531 = vmatprep.subr.bf16.mxu0 0
        %532 = vmatpush1.bf16.msra.mxu0 0
        %533 = vmatprep.mubr.bf16.mxu0 0
        %534 = vmatmul.mubr.bf16.gmra.mrb[0].mxu0 %v499
        %v535 = vpop.f32.mrb[0].mxu0
        %v536 = vadd.f32 0.0, %v535
        %v537 = vpop.f32.mrb[0].mxu0
        %v538 = vpop.f32.mrb[0].mxu0
        %v539 = vpop.f32.mrb[0].mxu0
        %540 = vdwg.mxu0
        %v541 = vmax.f32 %v536, 0.0
        %v542 = vmul.f32 %v541, %v541
        %v543 = vpack.c.bf16 %v542, %v542
        %v544 = vld [vmem:[%s421] sm:$0xff]
        %v545 = vld [vmem:[%s437] sm:$0xf]
        %v546 = vld [vmem:[%s437 + $0x4] sm:$0xf]
        %v547 = vld [vmem:[%s437 + $0x8] sm:$0xf]
        %v548 = vld [vmem:[%s437 + $0xc] sm:$0xf]
        %v549 = vld [vmem:[%s437 + $0x10] sm:$0xf]
        %v550 = vld [vmem:[%s437 + $0x14] sm:$0xf]
        %v551 = vld [vmem:[%s437 + $0x18] sm:$0xf]
        %v552 = vld [vmem:[%s437 + $0x1c] sm:$0xf]
        %v553 = vld [vmem:[%s437 + $0x20] sm:$0xf]
        %v554 = vld [vmem:[%s437 + $0x24] sm:$0xf]
        %v555 = vld [vmem:[%s437 + $0x28] sm:$0xf]
        %v556 = vld [vmem:[%s437 + $0x2c] sm:$0xf]
        %v557 = vld [vmem:[%s437 + $0x30] sm:$0xf]
        %v558 = vld [vmem:[%s437 + $0x34] sm:$0xf]
        %v559 = vld [vmem:[%s437 + $0x38] sm:$0xf]
        %v560 = vld [vmem:[%s437 + $0x3c] sm:$0xf]
        %v577 = vunpack.c.l.b16 %v545
        %v578 = vunpack.c.l.b16 %v546
        %v579 = vunpack.c.l.b16 %v547
        %v580 = vunpack.c.l.b16 %v548
        %v581 = vunpack.c.l.b16 %v549
        %v582 = vunpack.c.l.b16 %v550
        %v583 = vunpack.c.l.b16 %v551
        %v584 = vunpack.c.l.b16 %v552
        %v585 = vunpack.c.l.b16 %v553
        %v586 = vunpack.c.l.b16 %v554
        %v587 = vunpack.c.l.b16 %v555
        %v588 = vunpack.c.l.b16 %v556
        %v589 = vunpack.c.l.b16 %v557
        %v590 = vunpack.c.l.b16 %v558
        %v591 = vunpack.c.l.b16 %v559
        %v592 = vunpack.c.l.b16 %v560
        %v593 = vpack.c.b16 %v578, %v577
        %v594 = vpack.c.b16 %v580, %v579
        %v595 = vpack.c.b16 %v582, %v581
        %v596 = vpack.c.b16 %v584, %v583
        %v597 = vpack.c.b16 %v586, %v585
        %v598 = vpack.c.b16 %v588, %v587
        %v599 = vpack.c.b16 %v590, %v589
        %v600 = vpack.c.b16 %v592, %v591
        %609 = vmatprep.subr.bf16.mxu0 0
        %610 = vmatpush1.bf16.msra.mxu0 %v593
        %611 = vmatprep.subr.bf16.mxu0 0
        %612 = vmatpush1.bf16.msra.mxu0 %v594
        %613 = vmatprep.subr.bf16.mxu0 0
        %614 = vmatpush1.bf16.msra.mxu0 %v595
        %615 = vmatprep.subr.bf16.mxu0 0
        %616 = vmatpush1.bf16.msra.mxu0 %v596
        %617 = vmatprep.subr.bf16.mxu0 0
        %618 = vmatpush1.bf16.msra.mxu0 %v597
        %619 = vmatprep.subr.bf16.mxu0 0
        %620 = vmatpush1.bf16.msra.mxu0 %v598
        %621 = vmatprep.subr.bf16.mxu0 0
        %622 = vmatpush1.bf16.msra.mxu0 %v599
        %623 = vmatprep.subr.bf16.mxu0 0
        %624 = vmatpush1.bf16.msra.mxu0 %v600
        %625 = vmatprep.subr.bf16.mxu0 0
        %626 = vmatpush1.bf16.msra.mxu0 0
        %627 = vmatprep.subr.bf16.mxu0 0
        %628 = vmatpush1.bf16.msra.mxu0 0
        %629 = vmatprep.subr.bf16.mxu0 0
        %630 = vmatpush1.bf16.msra.mxu0 0
        %631 = vmatprep.subr.bf16.mxu0 0
        %632 = vmatpush1.bf16.msra.mxu0 0
        %633 = vmatprep.subr.bf16.mxu0 0
        %634 = vmatpush1.bf16.msra.mxu0 0
        %635 = vmatprep.subr.bf16.mxu0 0
        %636 = vmatpush1.bf16.msra.mxu0 0
        %637 = vmatprep.subr.bf16.mxu0 0
        %638 = vmatpush1.bf16.msra.mxu0 0
        %639 = vmatprep.subr.bf16.mxu0 0
        %640 = vmatpush1.bf16.msra.mxu0 0
        %641 = vmatprep.mubr.bf16.mxu0 0
        %642 = vmatmul.mubr.bf16.gmra.mrb[0].mxu0 %v543
        %v643 = vpop.f32.mrb[0].mxu0
        %v644 = vadd.f32 0.0, %v643
        %v645 = vpop.f32.mrb[0].mxu0
        %v646 = vpop.f32.mrb[0].mxu0
        %v647 = vpop.f32.mrb[0].mxu0
        %648 = vdwg.mxu0
        %v649 = vadd.f32 %v544, %v644
        %650 = vst.msk [vmem:[%s421] sm:$0xff] %vm497, %v649
        %p651 = scmp.eq.s32.totalorder %s27, 1
        // Predicated region
        $region98: #{tpu_custom_call.1} parent=88 // pred_check
          %p652 = pneg %p651
        $region99: #{tpu_custom_call.1} parent=88 // pred_check_branch
          %654 = sbr.rel (%p652) target = $region101
        $region100: #{tpu_custom_call.1} parent=88 // pred_region
          %v655 = vld [vmem:[%s4] sm:$0x1]
          %v656 = vld [vmem:[%s425] sm:$0xff]
          %v657 = vrot.slane %v656, 7
          %v658 = vlaneseq
          %v659 = vshrl.u32 %v658, 7
          %v660 = vld [vmem:[%s428] sm:$0x1]
          %vm661 = vcmp.eq.s32.totalorder %v659, 0
          %v662 = vsel %vm661, 1, 0
          %vm663 = vcmp.eq.s32.totalorder %v662, 1
          %v665 = vlaneseq
          %v666 = vshrl.u32 %v665, 7
          %v667 = vsub.s32 0, %v666
          %v668 = vrot.slane %v660, %v667
          %v670 = vsel %vm663, %v668, %v657
          %v671 = vld [vmem:[%s432] sm:$0xff]
          %673 = vset.pattern.permute.xlu0 0
          %674 = vperm.xlu0 %673, %v671
          %v675 = vpop.permute.xlu0 %674
          %v677 = vmul.f32 %v670, %v675
          %v679 = vlaneseq
          %v680 = vshrl.u32 %v679, 7
          %v681 = vsub.s32 0, %v680
          %v682 = vrot.slane %v655, %v681
          %v684 = vmul.f32 %v677, %v682
          %v685 = vadd.f32 %v656, %v684
          %v686 = vpack.c.bf16 %v685, %v685
          %v687 = vld [vmem:[%s7] sm:$0xf]
          %v688 = vld [vmem:[%s7 + $0x4] sm:$0xf]
          %v689 = vld [vmem:[%s7 + $0x8] sm:$0xf]
          %v690 = vld [vmem:[%s7 + $0xc] sm:$0xf]
          %v695 = vunpack.c.l.b16 %v687
          %v696 = vunpack.c.l.b16 %v688
          %v697 = vunpack.c.l.b16 %v689
          %v698 = vunpack.c.l.b16 %v690
          %v699 = vpack.c.b16 %v696, %v695
          %v700 = vpack.c.b16 %v698, %v697
          %v704 = vsel %vm497, %v686, 0
          %706 = vmatprep.subr.bf16.mxu0 0
          %707 = vmatpush1.bf16.msra.mxu0 %v699
          %708 = vmatprep.subr.bf16.mxu0 0
          %709 = vmatpush1.bf16.msra.mxu0 %v700
          %710 = vmatprep.subr.bf16.mxu0 0
          %711 = vmatpush1.bf16.msra.mxu0 0
          %712 = vmatprep.subr.bf16.mxu0 0
          %713 = vmatpush1.bf16.msra.mxu0 0
          %714 = vmatprep.subr.bf16.mxu0 0
          %715 = vmatpush1.bf16.msra.mxu0 0
          %716 = vmatprep.subr.bf16.mxu0 0
          %717 = vmatpush1.bf16.msra.mxu0 0
          %718 = vmatprep.subr.bf16.mxu0 0
          %719 = vmatpush1.bf16.msra.mxu0 0
          %720 = vmatprep.subr.bf16.mxu0 0
          %721 = vmatpush1.bf16.msra.mxu0 0
          %722 = vmatprep.subr.bf16.mxu0 0
          %723 = vmatpush1.bf16.msra.mxu0 0
          %724 = vmatprep.subr.bf16.mxu0 0
          %725 = vmatpush1.bf16.msra.mxu0 0
          %726 = vmatprep.subr.bf16.mxu0 0
          %727 = vmatpush1.bf16.msra.mxu0 0
          %728 = vmatprep.subr.bf16.mxu0 0
          %729 = vmatpush1.bf16.msra.mxu0 0
          %730 = vmatprep.subr.bf16.mxu0 0
          %731 = vmatpush1.bf16.msra.mxu0 0
          %732 = vmatprep.subr.bf16.mxu0 0
          %733 = vmatpush1.bf16.msra.mxu0 0
          %734 = vmatprep.subr.bf16.mxu0 0
          %735 = vmatpush1.bf16.msra.mxu0 0
          %736 = vmatprep.subr.bf16.mxu0 0
          %737 = vmatpush1.bf16.msra.mxu0 0
          %738 = vmatprep.mubr.bf16.mxu0 0
          %739 = vmatmul.mubr.bf16.gmra.mrb[0].mxu0 %v704
          %v740 = vpop.f32.mrb[0].mxu0
          %v741 = vadd.f32 0.0, %v740
          %v742 = vpop.f32.mrb[0].mxu0
          %v743 = vpop.f32.mrb[0].mxu0
          %v744 = vpop.f32.mrb[0].mxu0
          %745 = vdwg.mxu0
          %v746 = vxor.u32 %v741, 2147483648
          %v747 = vmul.f32 %v746, 1.442695
          %v748 = vpow.pop %v747
          %v749 = vadd.f32 %v748, 1.0
          %v750 = vrcp.pop %v749
          %v751 = vmul.f32 1.0, %v750
          %v752 = vld [vmem:[%s421] sm:$0xff]
          %v753 = vmul.f32 %v751, %v752
          %754 = vst.msk [vmem:[%s421] sm:$0xff] %vm497, %v753
        $region101: #{tpu_custom_call.1} parent=88 // pred_fallthru
          _
        %s755 = sand.u32 %s235, 1
        %s756 = scalar_lea.sflag [#allocation5], %s755
        %s757 = sand.u32 %s235, 1
        %s758 = smul.addr %s757, 8
        %s759 = scalar_lea.vmem [#allocation4], %s758
        // Predicated region
        $region102: #{tpu_custom_call.1} parent=88 // pred_check
          %p760 = pneg %p245
        $region103: #{tpu_custom_call.1} parent=88 // pred_check_branch
          %762 = sbr.rel (%p760) target = $region105
        $region104: #{tpu_custom_call.1} parent=88 // pred_region
          %s764 = ssub.s32 128, 128
          %765 = vsyncadd %s756, %s764
          %s766 = smul.addr %s26, 128
          %s767 = scalar_lea.hbm %s8, %s766
          %s769 = sshll.u32 %s759, 4
          %s770 = int_to_ptr.vmem [resolvable:$true] %s769
          %772 = dma.vmem_to_hbm [thread:$0]  %s770, 128, %s767, %s756
        $region105: #{tpu_custom_call.1} parent=88 // pred_fallthru
          _
      $region89: #{tpu_custom_call.1} parent=5 // pred_fallthru
        _
      %p773 = scmp.le.s32.totalorder 2, %s17
      // Predicated region
      $region106: #{tpu_custom_call.1} parent=5 // pred_check
        %p774 = pneg %p773
      $region107: #{tpu_custom_call.1} parent=5 // pred_check_branch
        %776 = sbr.rel (%p774) target = $region109
      $region108: #{tpu_custom_call.1} parent=5 // pred_region
        %s777 = ssub.s32 %s17, 2
        // Predicated region
        $region110: #{tpu_custom_call.1} parent=108 // pred_check
          %p778 = pneg %p251
        $region111: #{tpu_custom_call.1} parent=108 // pred_check_branch
          %780 = sbr.rel (%p778) target = $region113
        $region112: #{tpu_custom_call.1} parent=108 // pred_region
          %s781 = sand.u32 %s236, 1
          %s782 = scalar_lea.sflag [#allocation5], %s781
          %s783 = sand.u32 %s236, 1
          %s784 = smul.addr %s783, 8
          %s785 = scalar_lea.vmem [#allocation4], %s784
          %786 = dma.done %s782, 128
        $region113: #{tpu_custom_call.1} parent=108 // pred_fallthru
          _
      $region109: #{tpu_custom_call.1} parent=5 // pred_fallthru
        _
    $region6: #{tpu_custom_call.1} parent=1 // loop_footer
      %s21 = sadd.s32 1, %s17
    $region7: #{tpu_custom_call.1} parent=1 // loop_footer_branch
      %16 = sbr.rel target = $region3
    $region8: #{tpu_custom_call.1} parent=1 // loop_exit
      _
    %787 = vsyncpa [#allocation5], 1
    %s788 = scalar_lea.sflag [#allocation5], 1
    %789 = vsyncpa %s788, 1

</llo_original>
